<compile_context>
chip_gen: v7x
topology: tpu7x:2x2x1
jax: 0.10.0
libtpu: 0.0.40
codegen_flags: <defaults>
</compile_context>

<pallas_src>
import functools

import jax
import jax.numpy as jnp
from jax import lax
from jax.experimental import pallas as pl
from jax.experimental.pallas import tpu as pltpu

_EPS = 1e-12  # F.normalize default eps


def _spk_decoder_kernel(x_ref, w_ref, winv_ref, o_ref):
    """One grid step: full x (B, D), one W row-tile (tn, D), its inv-norms
    (1, tn) -> output tile (B, tn)."""
    x = x_ref[...].astype(jnp.float32)          # (B, D)  -- resident, tiny
    w = w_ref[...].astype(jnp.float32)          # (tn, D) -- streamed from HBM

    # s[b, n] = <x[b], w[n]> : contract the last axis of both operands.
    # No .T -> no per-step relayout/transpose; MXU consumes (N, K) directly.
    s = lax.dot_general(
        x, w,
        dimension_numbers=(((1,), (1,)), ((), ())),
        preferred_element_type=jnp.float32,
    )                                           # (B, tn)

    # Row inv-norm of x. Recomputed per step on purpose: it is < 1 vreg of VPU
    # work (hidden under the W DMA), and hoisting it into a scratch behind
    # @pl.when(j == 0) would be wrong under "parallel" megacore sharding.
    # rsqrt(max(||x||^2, eps^2)) == 1 / max(||x||, eps)  (EUP slot, not VPU div)
    x_inv = lax.rsqrt(
        jnp.maximum(jnp.sum(x * x, axis=-1, keepdims=True), _EPS * _EPS)
    )                                           # (B, 1)

    # Epilogue scale touches only B*tn elements (vs tn*D for normalizing W).
    o_ref[...] = (s * x_inv * winv_ref[...]).astype(o_ref.dtype)


def precompute_w_inv_norm(weight):
    """Per-row 1 / max(||w_n||, eps) of the class-embedding matrix, shape (1, N).

    W is a fixed parameter, so compute this once and reuse across forward calls
    (removes the per-tile sum(w*w) reduce from the kernel's hot loop)."""
    w = weight.astype(jnp.float32)
    ss = jnp.sum(w * w, axis=-1)
    return lax.rsqrt(jnp.maximum(ss, _EPS * _EPS)).reshape(1, -1)


def _pick_tile_n(n):
    """Largest tile (multiple of 128, capped at 2048) that keeps >= 4 grid
    steps (so v7x's two TensorCores both get work); for small N, cover it in
    one lane-dense block."""
    for cand in (2048, 1024, 512, 256):
        if pl.cdiv(n, cand) >= 4:
            return cand
    return min(2048, ((n + 127) // 128) * 128)


@functools.partial(jax.jit, static_argnames=("tile_n",))
def spk_decoder_forward(x, weight, w_inv_norm=None, *, tile_n=None):
    """x: (B, 1, D), weight: (N, D) f32/bf16, w_inv_norm: (1, N) f32 -> (B, 1, N) f32."""
    B, S, D = x.shape
    assert S == 1, "SPK_Decoder squeezes the singleton seq dim"
    N, Dw = weight.shape
    assert D == Dw

    if tile_n is None:
        tile_n = _pick_tile_n(N)
    assert tile_n % 128 == 0, "tile_n must be lane-aligned"

    if w_inv_norm is None:
        # Per-call fallback; prefer precomputing once outside (amortized).
        w_inv_norm = precompute_w_inv_norm(weight)

    x2 = x.reshape(B, D)                 # squeeze(1) -- glue in plain JAX
    grid_n = pl.cdiv(N, tile_n)          # partial last block handled by Pallas

    out2 = pl.pallas_call(
        _spk_decoder_kernel,
        out_shape=jax.ShapeDtypeStruct((B, N), jnp.float32),
        grid_spec=pltpu.PrefetchScalarGridSpec(
            num_scalar_prefetch=0,
            grid=(grid_n,),
            in_specs=[
                # full x every step (tiny, constant index -> stays resident)
                pl.BlockSpec((B, D), lambda j: (0, 0)),
                # one large row-tile of the class-embedding matrix per step
                pl.BlockSpec((tile_n, D), lambda j: (j, 0)),
                # matching slice of the precomputed W row inv-norms
                pl.BlockSpec((1, tile_n), lambda j: (0, j)),
            ],
            out_specs=pl.BlockSpec((B, tile_n), lambda j: (0, j)),
        ),
        compiler_params=pltpu.CompilerParams(
            dimension_semantics=("parallel",),
        ),
    )(x2, weight, w_inv_norm)

    return out2.reshape(B, 1, N)         # unsqueeze(1)


def _xavier_uniform(key, shape, dtype=jnp.float32):
    """Deterministic xavier_uniform matching nn.init.xavier_uniform_ for 2-D."""
    fan_out, fan_in = shape
    limit = (6.0 / (fan_in + fan_out)) ** 0.5
    return jax.random.uniform(key, shape, dtype, minval=-limit, maxval=limit)


def _reference(x, weight):
    """Pure-JAX reference of the PyTorch forward (lin_blocks=0)."""
    x2 = x.reshape(x.shape[0], x.shape[-1]).astype(jnp.float32)
    w = weight.astype(jnp.float32)
    xn = x2 / jnp.maximum(jnp.linalg.norm(x2, axis=-1, keepdims=True), _EPS)
    wn = w / jnp.maximum(jnp.linalg.norm(w, axis=-1, keepdims=True), _EPS)
    return (xn @ wn.T)[:, None, :]


if __name__ == "__main__":
    # Small shapes consistent with the module: x is (batch, 1, input_size);
    # out_neurons=2742 (module default) exercises the non-divisible grid path
    # (tile_n=512 -> 6 grid steps, masked final block).
    B, D, N = 2, 32, 2742

    key = jax.random.PRNGKey(0)
    kx, kw = jax.random.split(key)
    x = jax.random.normal(kx, (B, 1, D), dtype=jnp.float32)
    weight = _xavier_uniform(kw, (N, D))   # nn.Parameter(out_neurons, input_size)

    # --- f32 weight path (matches the PyTorch module numerics) ---
    w_inv = precompute_w_inv_norm(weight)  # once; parameters are fixed
    out = jax.block_until_ready(spk_decoder_forward(x, weight, w_inv))
    ref = _reference(x, weight)
    assert out.shape == (B, 1, N), out.shape
    assert jnp.allclose(out, ref, atol=1e-5, rtol=1e-5), (
        float(jnp.max(jnp.abs(out - ref)))
    )

    # --- bf16 weight streaming path (halves HBM traffic; f32 accumulation) ---
    w_bf16 = weight.astype(jnp.bfloat16)
    w_inv_bf16 = precompute_w_inv_norm(w_bf16)
    out_bf16 = jax.block_until_ready(spk_decoder_forward(x, w_bf16, w_inv_bf16))
    assert out_bf16.shape == (B, 1, N), out_bf16.shape
    assert jnp.allclose(out_bf16, ref, atol=5e-2, rtol=0.0), (
        float(jnp.max(jnp.abs(out_bf16 - ref)))
    )

    print("KERNEL_OK")
</pallas_src>

<mosaic_0001>
module attributes {stable_mosaic.version = 11 : i64} {
  func.func @_spk_decoder_kernel(%arg0: i32, %arg1: memref<2x32xf32, #tpu.memory_space<vmem>>, %arg2: memref<512x32xf32, #tpu.memory_space<vmem>>, %arg3: memref<1x512xf32, #tpu.memory_space<vmem>>, %arg4: memref<2x512xf32, #tpu.memory_space<vmem>>) attributes {dimension_semantics = [#tpu.dimension_semantics<parallel>], iteration_bounds = array<i64: 6>, scalar_prefetch = 0 : i64, scratch_operands = 0 : i64, tpu.core_type = #tpu.core_type<tc>, window_params = [{pipeline_mode = #tpu.pipeline_mode<synchronous>, transform_indices = @transform_0, window_bounds = array<i64: 2, 32>}, {transform_indices = @transform_1, window_bounds = array<i64: 512, 32>}, {transform_indices = @transform_2, window_bounds = array<i64: 1, 512>}, {transform_indices = @transform_3, window_bounds = array<i64: 2, 512>}]} {
    %c0 = arith.constant 0 : index
    %c0_0 = arith.constant 0 : index
    %0 = vector.load %arg1[%c0, %c0_0] : memref<2x32xf32, #tpu.memory_space<vmem>>, vector<2x32xf32>
    %c0_1 = arith.constant 0 : index
    %c0_2 = arith.constant 0 : index
    %1 = vector.load %arg2[%c0_1, %c0_2] : memref<512x32xf32, #tpu.memory_space<vmem>>, vector<512x32xf32>
    %cst = arith.constant dense<0.000000e+00> : vector<2x512xf32>
    %2 = tpu.matmul %0, %1, %cst {dimension_numbers = #tpu.dot_dimension_numbers<[1], [1], [0], [0], [0, 0, 1, 0], [], []>} : vector<2x32xf32>, vector<512x32xf32>, vector<2x512xf32> -> vector<2x512xf32>
    %3 = arith.mulf %0, %0 : vector<2x32xf32>
    %cst_3 = arith.constant dense<0.000000e+00> : vector<2xf32>
    %4 = vector.multi_reduction <add>, %3, %cst_3 [1] : vector<2x32xf32> to vector<2xf32>
    %5 = vector.shape_cast %4 : vector<2xf32> to vector<2x1xf32>
    %cst_4 = arith.constant 1.000000e-24 : f32
    %6 = vector.broadcast %cst_4 : f32 to vector<2x1xf32>
    %7 = arith.maximumf %5, %6 : vector<2x1xf32>
    %8 = math.rsqrt %7 : vector<2x1xf32>
    %9 = vector.broadcast %8 : vector<2x1xf32> to vector<2x512xf32>
    %10 = arith.mulf %2, %9 : vector<2x512xf32>
    %c0_5 = arith.constant 0 : index
    %c0_6 = arith.constant 0 : index
    %11 = vector.load %arg3[%c0_5, %c0_6] : memref<1x512xf32, #tpu.memory_space<vmem>>, vector<1x512xf32>
    %12 = vector.broadcast %11 : vector<1x512xf32> to vector<2x512xf32>
    %13 = arith.mulf %10, %12 : vector<2x512xf32>
    %c0_7 = arith.constant 0 : index
    %c0_8 = arith.constant 0 : index
    %14 = vector.load %arg4[%c0_7, %c0_8] : memref<2x512xf32, #tpu.memory_space<vmem>>, vector<2x512xf32>
    tpu.vector_store %arg4[%c0_7, %c0_8], %13 {strides = array<i32>} : memref<2x512xf32, #tpu.memory_space<vmem>>, vector<2x512xf32>,
    return
  }
  func.func @transform_0(%arg0: i32) -> (i32, i32) {
    %c0_i32 = arith.constant 0 : i32
    %c0_i32_0 = arith.constant 0 : i32
    %c0_i32_1 = arith.constant 0 : i32
    return %c0_i32, %c0_i32_0 : i32, i32
  }
  func.func @transform_1(%arg0: i32) -> (i32, i32) {
    %c0_i32 = arith.constant 0 : i32
    %c0_i32_0 = arith.constant 0 : i32
    return %arg0, %c0_i32 : i32, i32
  }
  func.func @transform_2(%arg0: i32) -> (i32, i32) {
    %c0_i32 = arith.constant 0 : i32
    %c0_i32_0 = arith.constant 0 : i32
    return %c0_i32, %arg0 : i32, i32
  }
  func.func @transform_3(%arg0: i32) -> (i32, i32) {
    %c0_i32 = arith.constant 0 : i32
    %c0_i32_0 = arith.constant 0 : i32
    return %c0_i32, %arg0 : i32, i32
  }
}

</mosaic_0001>

<llo_original>
// kernel: spk_decoder_forward.1
$region0: #{spk_decoder_forward.1}
  #allocation0 [shape = 'u32[]', space=smem, size = 0x4, offset = 0x4, fixed_abs, tag = 'smem constant byte address 0x4 - core index']
  #allocation1 [shape = 'u32[144,128]{1,0:T(1,128)}', space=vmem, size = 0x12000, scoped, tag = 'internal scratch']
  %s0 = inlined_call_operand.vmem [shape: f32[2,32], index: 0, kind: input, shape index: {}]
  %s1 = inlined_call_operand.vmem [shape: f32[2742,32], index: 1, kind: input, shape index: {}]
  %s2 = inlined_call_operand.vmem [shape: f32[1,2742], index: 2, kind: input, shape index: {}]
  %s3 = inlined_call_operand.vmem [shape: f32[2,2742], index: 3, kind: output, shape index: {}]
  %s4 = sld [smem:[#allocation0]]
  $region107: #{spk_decoder_forward.1} parent=0
    _
  %s6 = ssub.s32 1, %s4
  %s7 = scalar_select 0, %s6, %s4
  $region1: #{spk_decoder_forward.1} parent=0
    #allocation2 [shape = 'u8[8192]{0}', space=vmem, size = 0x2000, scoped, tag = 'output window, operand 0']
    loop: start=0, step=1, limit=8
    $region2: #{spk_decoder_forward.1} parent=1 // loop_pre_header
      _
    $region3: #{spk_decoder_forward.1} parent=1 // loop_header
      %s9 = sphi 0, %s13
      %p10 = scmp.ge.s32.totalorder %s9, 8
      %s17 = sphi 0, %s17
      %s19 = sphi 0, %s17
      %s20 = sphi 0, %s19
      %s34 = sphi 0, %s20
      %s40 = sphi 0, %s42
      %s43 = sphi 0, %s40
      %s44 = sphi 0, %s43
      %s60 = sphi 0, %s44
      %s66 = sphi 0, %s68
      %s69 = sphi 0, %s66
      %s70 = sphi 0, %s69
      %s86 = sphi 0, %s70
      %s92 = sphi 0, %s94
      %s95 = sphi 0, %s92
      %s96 = sphi 0, %s95
      %s112 = sphi 0, %s96
    $region4: #{spk_decoder_forward.1} parent=1 // loop_header_branch
      %12 = sbr.rel (%p10) target = $region8
    $region5: #{spk_decoder_forward.1} parent=1 // loop_body
      %s14 = ssub.s32 %s9, 1
      %s15 = ssub.s32 %s9, 2
      %s16 = sadd.s32 %s9, 1
      %s18 = sadd.s32 %s17, 1
      %p21 = scmp.eq.s32.totalorder %s9, 5
      %p22 = scmp.ne.s32.totalorder %s17, %s19
      %p23 = scmp.eq.s32.totalorder %s9, 0
      %p24 = por %p22, %p23
      %p25 = scmp.ne.s32.totalorder %s17, %s19
      %p26 = scmp.eq.s32.totalorder %s14, 5
      %p27 = por %p25, %p26
      %p28 = scmp.ne.s32.totalorder %s19, %s20
      %p29 = scmp.eq.s32.totalorder %s14, 0
      %p30 = por %p28, %p29
      %p31 = scmp.ne.s32.totalorder %s19, %s20
      %p32 = scmp.eq.s32.totalorder %s15, 5
      %p33 = por %p31, %p32
      %p35 = scmp.ne.s32.totalorder %s20, %s34
      %p36 = scmp.eq.s32.totalorder %s15, 0
      %p37 = por %p35, %p36
      %s38 = ssub.s32 %s9, %s16
      %p39 = scmp.eq.s32.totalorder %s38, 0
      %s41 = sadd.s32 %s40, 1
      %s42 = scalar_select %p39, %s40, %s41
      %p45 = pneg %p39
      %p46 = scmp.eq.s32.totalorder %s9, 5
      %p47 = por %p45, %p46
      %p48 = scmp.ne.s32.totalorder %s40, %s43
      %p49 = scmp.eq.s32.totalorder %s9, 0
      %p50 = por %p48, %p49
      %p51 = scmp.ne.s32.totalorder %s40, %s43
      %p52 = scmp.eq.s32.totalorder %s14, 5
      %p53 = por %p51, %p52
      %p54 = scmp.ne.s32.totalorder %s43, %s44
      %p55 = scmp.eq.s32.totalorder %s14, 0
      %p56 = por %p54, %p55
      %p57 = scmp.ne.s32.totalorder %s43, %s44
      %p58 = scmp.eq.s32.totalorder %s15, 5
      %p59 = por %p57, %p58
      %p61 = scmp.ne.s32.totalorder %s44, %s60
      %p62 = scmp.eq.s32.totalorder %s15, 0
      %p63 = por %p61, %p62
      %s64 = ssub.s32 %s9, %s16
      %p65 = scmp.eq.s32.totalorder %s64, 0
      %s67 = sadd.s32 %s66, 1
      %s68 = scalar_select %p65, %s66, %s67
      %p71 = pneg %p65
      %p72 = scmp.eq.s32.totalorder %s9, 5
      %p73 = por %p71, %p72
      %p74 = scmp.ne.s32.totalorder %s66, %s69
      %p75 = scmp.eq.s32.totalorder %s9, 0
      %p76 = por %p74, %p75
      %p77 = scmp.ne.s32.totalorder %s66, %s69
      %p78 = scmp.eq.s32.totalorder %s14, 5
      %p79 = por %p77, %p78
      %p80 = scmp.ne.s32.totalorder %s69, %s70
      %p81 = scmp.eq.s32.totalorder %s14, 0
      %p82 = por %p80, %p81
      %p83 = scmp.ne.s32.totalorder %s69, %s70
      %p84 = scmp.eq.s32.totalorder %s15, 5
      %p85 = por %p83, %p84
      %p87 = scmp.ne.s32.totalorder %s70, %s86
      %p88 = scmp.eq.s32.totalorder %s15, 0
      %p89 = por %p87, %p88
      %s90 = ssub.s32 %s9, %s16
      %p91 = scmp.eq.s32.totalorder %s90, 0
      %s93 = sadd.s32 %s92, 1
      %s94 = scalar_select %p91, %s92, %s93
      %p97 = pneg %p91
      %p98 = scmp.eq.s32.totalorder %s9, 5
      %p99 = por %p97, %p98
      %p100 = scmp.ne.s32.totalorder %s92, %s95
      %p101 = scmp.eq.s32.totalorder %s9, 0
      %p102 = por %p100, %p101
      %p103 = scmp.ne.s32.totalorder %s92, %s95
      %p104 = scmp.eq.s32.totalorder %s14, 5
      %p105 = por %p103, %p104
      %p106 = scmp.ne.s32.totalorder %s95, %s96
      %p107 = scmp.eq.s32.totalorder %s14, 0
      %p108 = por %p106, %p107
      %p109 = scmp.ne.s32.totalorder %s95, %s96
      %p110 = scmp.eq.s32.totalorder %s15, 5
      %p111 = por %p109, %p110
      %p113 = scmp.ne.s32.totalorder %s96, %s112
      %p114 = scmp.eq.s32.totalorder %s15, 0
      %p115 = por %p113, %p114
      %p116 = scmp.le.s32.totalorder 1, %s9
      %p117 = scmp.lt.s32.totalorder %s9, 7
      %p118 = pnand %p116, %p117
      %p119 = pneg %p118
      // Predicated region
      $region9: #{spk_decoder_forward.1} parent=5 // pred_check
        _
      $region10: #{spk_decoder_forward.1} parent=5 // pred_check_branch
        %121 = sbr.rel (%p118) target = $region12
      $region11: #{spk_decoder_forward.1} parent=5 // pred_region
        %s122 = ssub.s32 %s9, 1
        // Predicated region
        $region13: #{spk_decoder_forward.1} parent=11 // pred_check
          %p123 = pneg %p30
        $region14: #{spk_decoder_forward.1} parent=11 // pred_check_branch
          %125 = sbr.rel (%p123) target = $region16
        $region15: #{spk_decoder_forward.1} parent=11 // pred_region
          _
        $region16: #{spk_decoder_forward.1} parent=11 // pred_fallthru
          _
      $region12: #{spk_decoder_forward.1} parent=5 // pred_fallthru
        _
      %p126 = scmp.lt.s32.totalorder %s9, 6
      // Predicated region
      $region17: #{spk_decoder_forward.1} parent=5 // pred_check
        %p127 = pneg %p126
      $region18: #{spk_decoder_forward.1} parent=5 // pred_check_branch
        %129 = sbr.rel (%p127) target = $region20
      $region19: #{spk_decoder_forward.1} parent=5 // pred_region
        // Predicated region
        $region21: #{spk_decoder_forward.1} parent=19 // pred_check
          %p130 = pneg %p50
        $region22: #{spk_decoder_forward.1} parent=19 // pred_check_branch
          %132 = sbr.rel (%p130) target = $region24
        $region23: #{spk_decoder_forward.1} parent=19 // pred_region
          %s133 = smul.u32 64, %s9
          %s134 = ssub.s32 343, %s133
          %p135 = scmp.lt.s32.totalorder %s134, 64
          %s136 = scalar_select %p135, %s134, 64
          %s137 = smul.u32 128, %s136
          %p138 = scmp.lt.s32.totalorder %s133, 342
          %s139 = scalar_select %p138, %s133, 342
          %s140 = smul.addr %s139, 8
          %s141 = scalar_lea.vmem %s1, %s140
          %s142 = smul.u32 64, %s9
          %s143 = ssub.s32 343, %s142
          %p144 = scmp.lt.s32.totalorder %s143, 64
          %s145 = scalar_select %p144, %s143, 64
          %s146 = smul.u32 128, %s145
        $region24: #{spk_decoder_forward.1} parent=19 // pred_fallthru
          _
        // Predicated region
        $region25: #{spk_decoder_forward.1} parent=19 // pred_check
          %p147 = pneg %p76
        $region26: #{spk_decoder_forward.1} parent=19 // pred_check_branch
          %149 = sbr.rel (%p147) target = $region28
        $region27: #{spk_decoder_forward.1} parent=19 // pred_region
          %s150 = smul.u32 4, %s9
          %s151 = ssub.s32 22, %s150
          %p152 = scmp.lt.s32.totalorder %s151, 4
          %s153 = scalar_select %p152, %s151, 4
          %s154 = smul.u32 16, %s153
          %p155 = scmp.lt.s32.totalorder %s150, 21
          %s156 = scalar_select %p155, %s150, 21
          %s157 = scalar_lea.vmem %s2, %s156
          %s158 = smul.u32 4, %s9
          %s159 = ssub.s32 22, %s158
          %p160 = scmp.lt.s32.totalorder %s159, 4
          %s161 = scalar_select %p160, %s159, 4
          %s162 = smul.u32 16, %s161
        $region28: #{spk_decoder_forward.1} parent=19 // pred_fallthru
          _
      $region20: #{spk_decoder_forward.1} parent=5 // pred_fallthru
        _
      %p163 = scmp.le.s32.totalorder 1, %s9
      %p164 = scmp.lt.s32.totalorder %s9, 7
      %p165 = pnand %p163, %p164
      %p166 = pneg %p165
      // Predicated region
      $region29: #{spk_decoder_forward.1} parent=5 // pred_check
        _
      $region30: #{spk_decoder_forward.1} parent=5 // pred_check_branch
        %168 = sbr.rel (%p165) target = $region32
      $region31: #{spk_decoder_forward.1} parent=5 // pred_region
        %s169 = ssub.s32 %s9, 1
        %p170 = pneg %p30
        %p171 = pneg %p27
        %s172 = smul.u32 64, %s14
        %s173 = ssub.s32 343, %s172
        %p174 = scmp.lt.s32.totalorder %s173, 64
        %s175 = scalar_select %p174, %s173, 64
        %s176 = smul.u32 128, %s175
        %p177 = scmp.lt.s32.totalorder %s172, 342
        %s178 = scalar_select %p177, %s172, 342
        %s179 = smul.addr %s178, 8
        %s180 = scalar_lea.vmem %s1, %s179
        %p181 = pneg %p56
        %p182 = pneg %p53
        %s183 = smul.u32 4, %s14
        %s184 = ssub.s32 22, %s183
        %p185 = scmp.lt.s32.totalorder %s184, 4
        %s186 = scalar_select %p185, %s184, 4
        %s187 = smul.u32 16, %s186
        %p188 = scmp.lt.s32.totalorder %s183, 21
        %s189 = scalar_select %p188, %s183, 21
        %s190 = scalar_lea.vmem %s2, %s189
        %p191 = pneg %p82
        %p192 = pneg %p79
        %p193 = pneg %p108
        %p194 = pneg %p105
        %s195 = sand.u32 %s95, 1
        %s196 = sand.u32 %s95, 1
        %s197 = smul.addr %s196, 8
        %s198 = scalar_lea.vmem [#allocation2], %s197
        %s199 = smul.u32 64, %s14
        %s200 = ssub.s32 343, %s199
        %p201 = scmp.lt.s32.totalorder %s200, 64
        %s202 = scalar_select %p201, %s200, 64
        %s203 = smul.u32 128, %s202
        %p204 = scmp.lt.s32.totalorder %s199, 342
        %s205 = scalar_select %p204, %s199, 342
        %s206 = smul.addr %s205, 8
        %s207 = scalar_lea.vmem %s1, %s206
        %s208 = smul.u32 64, %s14
        %s209 = ssub.s32 343, %s208
        %p210 = scmp.lt.s32.totalorder %s209, 64
        %s211 = scalar_select %p210, %s209, 64
        %s212 = smul.u32 128, %s211
        %s213 = smul.u32 4, %s14
        %s214 = ssub.s32 22, %s213
        %p215 = scmp.lt.s32.totalorder %s214, 4
        %s216 = scalar_select %p215, %s214, 4
        %s217 = smul.u32 16, %s216
        %p218 = scmp.lt.s32.totalorder %s213, 21
        %s219 = scalar_select %p218, %s213, 21
        %s220 = scalar_lea.vmem %s2, %s219
        %s221 = smul.u32 4, %s14
        %s222 = ssub.s32 22, %s221
        %p223 = scmp.lt.s32.totalorder %s222, 4
        %s224 = scalar_select %p223, %s222, 4
        %s225 = smul.u32 16, %s224
        %s226 = smul.u32 4, %s14
        %s227 = ssub.s32 22, %s226
        %p228 = scmp.lt.s32.totalorder %s227, 4
        %s229 = scalar_select %p228, %s227, 4
        %s230 = smul.u32 32, %s229
        %v231 = vld [vmem:[%s0] sm:$0x3]
        %v232 = vld [vmem:[%s207] sm:$0xff]
        %v233 = vld [vmem:[%s207 + $0x8] sm:$0xff]
        %v234 = vld [vmem:[%s207 + $0x10] sm:$0xff]
        %v235 = vld [vmem:[%s207 + $0x18] sm:$0xff]
        %v236 = vld [vmem:[%s207 + $0x20] sm:$0xff]
        %v237 = vld [vmem:[%s207 + $0x28] sm:$0xff]
        %v238 = vld [vmem:[%s207 + $0x30] sm:$0xff]
        %v239 = vld [vmem:[%s207 + $0x38] sm:$0xff]
        %v240 = vld [vmem:[%s207 + $0x40] sm:$0xff]
        %v241 = vld [vmem:[%s207 + $0x48] sm:$0xff]
        %v242 = vld [vmem:[%s207 + $0x50] sm:$0xff]
        %v243 = vld [vmem:[%s207 + $0x58] sm:$0xff]
        %v244 = vld [vmem:[%s207 + $0x60] sm:$0xff]
        %v245 = vld [vmem:[%s207 + $0x68] sm:$0xff]
        %v246 = vld [vmem:[%s207 + $0x70] sm:$0xff]
        %v247 = vld [vmem:[%s207 + $0x78] sm:$0xff]
        %v248 = vld [vmem:[%s207 + $0x80] sm:$0xff]
        %v249 = vld [vmem:[%s207 + $0x88] sm:$0xff]
        %v250 = vld [vmem:[%s207 + $0x90] sm:$0xff]
        %v251 = vld [vmem:[%s207 + $0x98] sm:$0xff]
        %v252 = vld [vmem:[%s207 + $0xa0] sm:$0xff]
        %v253 = vld [vmem:[%s207 + $0xa8] sm:$0xff]
        %v254 = vld [vmem:[%s207 + $0xb0] sm:$0xff]
        %v255 = vld [vmem:[%s207 + $0xb8] sm:$0xff]
        %v256 = vld [vmem:[%s207 + $0xc0] sm:$0xff]
        %v257 = vld [vmem:[%s207 + $0xc8] sm:$0xff]
        %v258 = vld [vmem:[%s207 + $0xd0] sm:$0xff]
        %v259 = vld [vmem:[%s207 + $0xd8] sm:$0xff]
        %v260 = vld [vmem:[%s207 + $0xe0] sm:$0xff]
        %v261 = vld [vmem:[%s207 + $0xe8] sm:$0xff]
        %v262 = vld [vmem:[%s207 + $0xf0] sm:$0xff]
        %v263 = vld [vmem:[%s207 + $0xf8] sm:$0xff]
        %v264 = vld [vmem:[%s207 + $0x100] sm:$0xff]
        %v265 = vld [vmem:[%s207 + $0x108] sm:$0xff]
        %v266 = vld [vmem:[%s207 + $0x110] sm:$0xff]
        %v267 = vld [vmem:[%s207 + $0x118] sm:$0xff]
        %v268 = vld [vmem:[%s207 + $0x120] sm:$0xff]
        %v269 = vld [vmem:[%s207 + $0x128] sm:$0xff]
        %v270 = vld [vmem:[%s207 + $0x130] sm:$0xff]
        %v271 = vld [vmem:[%s207 + $0x138] sm:$0xff]
        %v272 = vld [vmem:[%s207 + $0x140] sm:$0xff]
        %v273 = vld [vmem:[%s207 + $0x148] sm:$0xff]
        %v274 = vld [vmem:[%s207 + $0x150] sm:$0xff]
        %v275 = vld [vmem:[%s207 + $0x158] sm:$0xff]
        %v276 = vld [vmem:[%s207 + $0x160] sm:$0xff]
        %v277 = vld [vmem:[%s207 + $0x168] sm:$0xff]
        %v278 = vld [vmem:[%s207 + $0x170] sm:$0xff]
        %v279 = vld [vmem:[%s207 + $0x178] sm:$0xff]
        %v280 = vld [vmem:[%s207 + $0x180] sm:$0xff]
        %v281 = vld [vmem:[%s207 + $0x188] sm:$0xff]
        %v282 = vld [vmem:[%s207 + $0x190] sm:$0xff]
        %v283 = vld [vmem:[%s207 + $0x198] sm:$0xff]
        %v284 = vld [vmem:[%s207 + $0x1a0] sm:$0xff]
        %v285 = vld [vmem:[%s207 + $0x1a8] sm:$0xff]
        %v286 = vld [vmem:[%s207 + $0x1b0] sm:$0xff]
        %v287 = vld [vmem:[%s207 + $0x1b8] sm:$0xff]
        %v288 = vld [vmem:[%s207 + $0x1c0] sm:$0xff]
        %v289 = vld [vmem:[%s207 + $0x1c8] sm:$0xff]
        %v290 = vld [vmem:[%s207 + $0x1d0] sm:$0xff]
        %v291 = vld [vmem:[%s207 + $0x1d8] sm:$0xff]
        %v292 = vld [vmem:[%s207 + $0x1e0] sm:$0xff]
        %v293 = vld [vmem:[%s207 + $0x1e8] sm:$0xff]
        %v294 = vld [vmem:[%s207 + $0x1f0] sm:$0xff]
        %v295 = vld [vmem:[%s207 + $0x1f8] sm:$0xff]
        %vm296 = vcmask 261120
        %v298 = vsel %vm296, %v231, 0
        %v301 = vsel %vm296, %v232, 0
        %v304 = vsel %vm296, %v233, 0
        %v307 = vsel %vm296, %v234, 0
        %v310 = vsel %vm296, %v235, 0
        %v313 = vsel %vm296, %v236, 0
        %v316 = vsel %vm296, %v237, 0
        %v319 = vsel %vm296, %v238, 0
        %v322 = vsel %vm296, %v239, 0
        %v325 = vsel %vm296, %v240, 0
        %v328 = vsel %vm296, %v241, 0
        %v331 = vsel %vm296, %v242, 0
        %v334 = vsel %vm296, %v243, 0
        %v337 = vsel %vm296, %v244, 0
        %v340 = vsel %vm296, %v245, 0
        %v343 = vsel %vm296, %v246, 0
        %v346 = vsel %vm296, %v247, 0
        %v349 = vsel %vm296, %v248, 0
        %v352 = vsel %vm296, %v249, 0
        %v355 = vsel %vm296, %v250, 0
        %v358 = vsel %vm296, %v251, 0
        %v361 = vsel %vm296, %v252, 0
        %v364 = vsel %vm296, %v253, 0
        %v367 = vsel %vm296, %v254, 0
        %v370 = vsel %vm296, %v255, 0
        %v373 = vsel %vm296, %v256, 0
        %v376 = vsel %vm296, %v257, 0
        %v379 = vsel %vm296, %v258, 0
        %v382 = vsel %vm296, %v259, 0
        %v385 = vsel %vm296, %v260, 0
        %v388 = vsel %vm296, %v261, 0
        %v391 = vsel %vm296, %v262, 0
        %v394 = vsel %vm296, %v263, 0
        %v397 = vsel %vm296, %v264, 0
        %v400 = vsel %vm296, %v265, 0
        %v403 = vsel %vm296, %v266, 0
        %v406 = vsel %vm296, %v267, 0
        %v409 = vsel %vm296, %v268, 0
        %v412 = vsel %vm296, %v269, 0
        %v415 = vsel %vm296, %v270, 0
        %v418 = vsel %vm296, %v271, 0
        %v421 = vsel %vm296, %v272, 0
        %v424 = vsel %vm296, %v273, 0
        %v427 = vsel %vm296, %v274, 0
        %v430 = vsel %vm296, %v275, 0
        %v433 = vsel %vm296, %v276, 0
        %v436 = vsel %vm296, %v277, 0
        %v439 = vsel %vm296, %v278, 0
        %v442 = vsel %vm296, %v279, 0
        %v445 = vsel %vm296, %v280, 0
        %v448 = vsel %vm296, %v281, 0
        %v451 = vsel %vm296, %v282, 0
        %v454 = vsel %vm296, %v283, 0
        %v457 = vsel %vm296, %v284, 0
        %v460 = vsel %vm296, %v285, 0
        %v463 = vsel %vm296, %v286, 0
        %v466 = vsel %vm296, %v287, 0
        %v469 = vsel %vm296, %v288, 0
        %v472 = vsel %vm296, %v289, 0
        %v475 = vsel %vm296, %v290, 0
        %v478 = vsel %vm296, %v291, 0
        %v481 = vsel %vm296, %v292, 0
        %v484 = vsel %vm296, %v293, 0
        %v487 = vsel %vm296, %v294, 0
        %v490 = vsel %vm296, %v295, 0
        %492 = vmatprep.subr.mxu0 0.0
        %493 = vmatpush1.xpose.msra.mxu0 %v301
        %494 = vmatprep.subr.mxu0 0.0
        %495 = vmatpush1.xpose.msra.mxu0 %v304
        %496 = vmatprep.subr.mxu0 0.0
        %497 = vmatpush1.xpose.msra.mxu0 %v307
        %498 = vmatprep.subr.mxu0 0.0
        %499 = vmatpush1.xpose.msra.mxu0 %v310
        %500 = vmatprep.subr.mxu0 0.0
        %501 = vmatpush1.xpose.msra.mxu0 %v313
        %502 = vmatprep.subr.mxu0 0.0
        %503 = vmatpush1.xpose.msra.mxu0 %v316
        %504 = vmatprep.subr.mxu0 0.0
        %505 = vmatpush1.xpose.msra.mxu0 %v319
        %506 = vmatprep.subr.mxu0 0.0
        %507 = vmatpush1.xpose.msra.mxu0 %v322
        %508 = vmatprep.subr.mxu0 0.0
        %509 = vmatpush1.xpose.msra.mxu0 %v325
        %510 = vmatprep.subr.mxu0 0.0
        %511 = vmatpush1.xpose.msra.mxu0 %v328
        %512 = vmatprep.subr.mxu0 0.0
        %513 = vmatpush1.xpose.msra.mxu0 %v331
        %514 = vmatprep.subr.mxu0 0.0
        %515 = vmatpush1.xpose.msra.mxu0 %v334
        %516 = vmatprep.subr.mxu0 0.0
        %517 = vmatpush1.xpose.msra.mxu0 %v337
        %518 = vmatprep.subr.mxu0 0.0
        %519 = vmatpush1.xpose.msra.mxu0 %v340
        %520 = vmatprep.subr.mxu0 0.0
        %521 = vmatpush1.xpose.msra.mxu0 %v343
        %522 = vmatprep.subr.mxu0 0.0
        %523 = vmatpush1.xpose.msra.mxu0 %v346
        %524 = vmatprep.subr.mxu0 0.0
        %525 = vmatpush1.xpose.msra.mxu0 %v349
        %526 = vmatprep.subr.mxu0 0.0
        %527 = vmatpush1.xpose.msra.mxu0 %v352
        %528 = vmatprep.subr.mxu0 0.0
        %529 = vmatpush1.xpose.msra.mxu0 %v355
        %530 = vmatprep.subr.mxu0 0.0
        %531 = vmatpush1.xpose.msra.mxu0 %v358
        %532 = vmatprep.subr.mxu0 0.0
        %533 = vmatpush1.xpose.msra.mxu0 %v361
        %534 = vmatprep.subr.mxu0 0.0
        %535 = vmatpush1.xpose.msra.mxu0 %v364
        %536 = vmatprep.subr.mxu0 0.0
        %537 = vmatpush1.xpose.msra.mxu0 %v367
        %538 = vmatprep.subr.mxu0 0.0
        %539 = vmatpush1.xpose.msra.mxu0 %v370
        %540 = vmatprep.subr.mxu0 0.0
        %541 = vmatpush1.xpose.msra.mxu0 %v373
        %542 = vmatprep.subr.mxu0 0.0
        %543 = vmatpush1.xpose.msra.mxu0 %v376
        %544 = vmatprep.subr.mxu0 0.0
        %545 = vmatpush1.xpose.msra.mxu0 %v379
        %546 = vmatprep.subr.mxu0 0.0
        %547 = vmatpush1.xpose.msra.mxu0 %v382
        %548 = vmatprep.subr.mxu0 0.0
        %549 = vmatpush1.xpose.msra.mxu0 %v385
        %550 = vmatprep.subr.mxu0 0.0
        %551 = vmatpush1.xpose.msra.mxu0 %v388
        %552 = vmatprep.subr.mxu0 0.0
        %553 = vmatpush1.xpose.msra.mxu0 %v391
        %554 = vmatprep.subr.mxu0 0.0
        %555 = vmatpush1.xpose.msra.mxu0 %v394
        %556 = vmatprep.mubr.f32.mxu0 0.0
        %557 = vmatmul.mubr.f32.gmra.mrb[0].mxu0 %v298
        %v558 = vpop.f32.mrb[0].mxu0
        %v559 = vadd.f32 0.0, %v558
        %v560 = vpop.f32.mrb[0].mxu0
        %v561 = vadd.f32 0.0, %v560
        %562 = vdwg.mxu0
        %563 = vmatprep.subr.mxu0 0.0
        %564 = vmatpush1.xpose.msra.mxu0 %v397
        %565 = vmatprep.subr.mxu0 0.0
        %566 = vmatpush1.xpose.msra.mxu0 %v400
        %567 = vmatprep.subr.mxu0 0.0
        %568 = vmatpush1.xpose.msra.mxu0 %v403
        %569 = vmatprep.subr.mxu0 0.0
        %570 = vmatpush1.xpose.msra.mxu0 %v406
        %571 = vmatprep.subr.mxu0 0.0
        %572 = vmatpush1.xpose.msra.mxu0 %v409
        %573 = vmatprep.subr.mxu0 0.0
        %574 = vmatpush1.xpose.msra.mxu0 %v412
        %575 = vmatprep.subr.mxu0 0.0
        %576 = vmatpush1.xpose.msra.mxu0 %v415
        %577 = vmatprep.subr.mxu0 0.0
        %578 = vmatpush1.xpose.msra.mxu0 %v418
        %579 = vmatprep.subr.mxu0 0.0
        %580 = vmatpush1.xpose.msra.mxu0 %v421
        %581 = vmatprep.subr.mxu0 0.0
        %582 = vmatpush1.xpose.msra.mxu0 %v424
        %583 = vmatprep.subr.mxu0 0.0
        %584 = vmatpush1.xpose.msra.mxu0 %v427
        %585 = vmatprep.subr.mxu0 0.0
        %586 = vmatpush1.xpose.msra.mxu0 %v430
        %587 = vmatprep.subr.mxu0 0.0
        %588 = vmatpush1.xpose.msra.mxu0 %v433
        %589 = vmatprep.subr.mxu0 0.0
        %590 = vmatpush1.xpose.msra.mxu0 %v436
        %591 = vmatprep.subr.mxu0 0.0
        %592 = vmatpush1.xpose.msra.mxu0 %v439
        %593 = vmatprep.subr.mxu0 0.0
        %594 = vmatpush1.xpose.msra.mxu0 %v442
        %595 = vmatprep.subr.mxu0 0.0
        %596 = vmatpush1.xpose.msra.mxu0 %v445
        %597 = vmatprep.subr.mxu0 0.0
        %598 = vmatpush1.xpose.msra.mxu0 %v448
        %599 = vmatprep.subr.mxu0 0.0
        %600 = vmatpush1.xpose.msra.mxu0 %v451
        %601 = vmatprep.subr.mxu0 0.0
        %602 = vmatpush1.xpose.msra.mxu0 %v454
        %603 = vmatprep.subr.mxu0 0.0
        %604 = vmatpush1.xpose.msra.mxu0 %v457
        %605 = vmatprep.subr.mxu0 0.0
        %606 = vmatpush1.xpose.msra.mxu0 %v460
        %607 = vmatprep.subr.mxu0 0.0
        %608 = vmatpush1.xpose.msra.mxu0 %v463
        %609 = vmatprep.subr.mxu0 0.0
        %610 = vmatpush1.xpose.msra.mxu0 %v466
        %611 = vmatprep.subr.mxu0 0.0
        %612 = vmatpush1.xpose.msra.mxu0 %v469
        %613 = vmatprep.subr.mxu0 0.0
        %614 = vmatpush1.xpose.msra.mxu0 %v472
        %615 = vmatprep.subr.mxu0 0.0
        %616 = vmatpush1.xpose.msra.mxu0 %v475
        %617 = vmatprep.subr.mxu0 0.0
        %618 = vmatpush1.xpose.msra.mxu0 %v478
        %619 = vmatprep.subr.mxu0 0.0
        %620 = vmatpush1.xpose.msra.mxu0 %v481
        %621 = vmatprep.subr.mxu0 0.0
        %622 = vmatpush1.xpose.msra.mxu0 %v484
        %623 = vmatprep.subr.mxu0 0.0
        %624 = vmatpush1.xpose.msra.mxu0 %v487
        %625 = vmatprep.subr.mxu0 0.0
        %626 = vmatpush1.xpose.msra.mxu0 %v490
        %627 = vmatprep.mubr.f32.mxu0 0.0
        %628 = vmatmul.mubr.f32.gmra.mrb[0].mxu0 %v298
        %v629 = vpop.f32.mrb[0].mxu0
        %v630 = vadd.f32 0.0, %v629
        %v631 = vpop.f32.mrb[0].mxu0
        %v632 = vadd.f32 0.0, %v631
        %633 = vdwg.mxu0
        %v634 = vmul.f32 %v231, %v231
        %vm635 = vcmask 254976
        %v636 = vsel %vm635, %v634, 0.0
        %637 = vadd.xlane.f32.xlu0 %v636
        %v638 = vpop.xlane.xlu0 %637
        %v639 = vmax.f32 %v638, 1e-24
        %v640 = vrsqrt.pop %v639
        %v641 = vmul.f32 %v559, %v640
        %v642 = vmul.f32 %v561, %v640
        %v643 = vmul.f32 %v630, %v640
        %v644 = vmul.f32 %v632, %v640
        %v645 = vld [vmem:[%s220] sm:$0xf]
        %v647 = vlaneseq
        %v648 = vshrl.u32 %v647, 7
        %v649 = vsub.s32 0, %v648
        %v650 = vrot.slane %v645, %v649
        %v651 = vlaneseq
        %v652 = vshrl.u32 %v651, 7
        %v653 = vsub.s32 1, %v652
        %v654 = vrot.slane %v645, %v653
        %v655 = vlaneseq
        %v656 = vshrl.u32 %v655, 7
        %v657 = vsub.s32 2, %v656
        %v658 = vrot.slane %v645, %v657
        %v659 = vlaneseq
        %v660 = vshrl.u32 %v659, 7
        %v661 = vsub.s32 3, %v660
        %v662 = vrot.slane %v645, %v661
        %v667 = vmul.f32 %v641, %v650
        %v668 = vmul.f32 %v642, %v654
        %v669 = vmul.f32 %v643, %v658
        %v670 = vmul.f32 %v644, %v662
        %v675 = vcombine.low %v667, %v668
        %v676 = vcombine.low %v669, %v670
        %v678 = vunpack.c.l.s4 1983009808
        %v679 = vunpack.c.0.s8 %v678
        %v680 = vlaneseq
        %v681 = vshrl.u32 %v680, 7
        %v682 = vsub.s32 %v679, %v681
        %v683 = vrot.slane %v675, %v682
        %v685 = vunpack.c.l.s4 1983009808
        %v686 = vunpack.c.0.s8 %v685
        %v687 = vlaneseq
        %v688 = vshrl.u32 %v687, 7
        %v689 = vsub.s32 %v686, %v688
        %v690 = vrot.slane %v676, %v689
        %v691 = vcombine.low %v683, %v690
        %693 = vst [vmem:[%s198] sm:$0xff] %v691
        %s694 = sand.u32 %s95, 1
        %s695 = sand.u32 %s95, 1
        %s696 = smul.addr %s695, 8
        %s697 = scalar_lea.vmem [#allocation2], %s696
        // Predicated region
        $region33: #{spk_decoder_forward.1} parent=31 // pred_check
          %p698 = pneg %p105
        $region34: #{spk_decoder_forward.1} parent=31 // pred_check_branch
          %700 = sbr.rel (%p698) target = $region36
        $region35: #{spk_decoder_forward.1} parent=31 // pred_region
          %s701 = smul.u32 4, %s14
          %s702 = ssub.s32 22, %s701
          %p703 = scmp.lt.s32.totalorder %s702, 4
          %s704 = scalar_select %p703, %s702, 4
          %s705 = smul.u32 32, %s704
          %p706 = scmp.ne.s32.totalorder 0, %s705
          %s707 = smul.addr %s701, 2
          %s708 = scalar_lea.vmem %s3, %s707
          %s709 = smul.u32 %s704, 2
          // Predicated region
          $region37: #{spk_decoder_forward.1} parent=35 // pred_check
            %p710 = pneg %p706
          $region38: #{spk_decoder_forward.1} parent=35 // pred_check_branch
            %712 = sbr.rel (%p710) target = $region40
          $region39: #{spk_decoder_forward.1} parent=35 // pred_region
            %p713 = scmp.lt.u32.totalorder %s709, 8
            %p714 = pneg %p713
            // Predicated region
            $region41: #{spk_decoder_forward.1} parent=39 // pred_check
              _
            $region42: #{spk_decoder_forward.1} parent=39 // pred_check_branch
              %716 = sbr.rel (%p713) target = $region44
            $region43: #{spk_decoder_forward.1} parent=39 // pred_region
              %s731 = sand.u32 %s709, 7
              %p732 = scmp.eq.s32.totalorder %s731, 0
              // Predicated region
              $region56: #{spk_decoder_forward.1} parent=43 // pred_check
                %p733 = pneg %p732
              $region57: #{spk_decoder_forward.1} parent=43 // pred_check_branch
                %735 = sbr.rel (%p733) target = $region59
              $region58: #{spk_decoder_forward.1} parent=43 // pred_region
                %s736 = sshrl.u32 %s709, 3
                %s737 = sshrl.u32 %s736, 6
                // While loop
                $region60: #{spk_decoder_forward.1} parent=58 // loop_pre_header
                  _
                $region61: #{spk_decoder_forward.1} parent=58 // loop_header
                  %s741 = sphi 0, %s743
                  %p742 = scmp.ge.s32.totalorder %s741, %s737
                  %s746 = sphi 0, %s879
                  %s747 = sphi %s697, %s882
                  %s748 = sphi %s708, %s883
                $region62: #{spk_decoder_forward.1} parent=58 // loop_header_branch
                  %745 = sbr.rel (%p742) target = $region66
                $region63: #{spk_decoder_forward.1} parent=58 // loop_body
                  %v749 = vld [vmem:[%s747] sm:$0xff]
                  %750 = vst [vmem:[%s748] sm:$0xff] %v749
                  %v751 = vld [vmem:[%s747 + $0x8] sm:$0xff]
                  %752 = vst [vmem:[%s748 + $0x8] sm:$0xff] %v751
                  %v753 = vld [vmem:[%s747 + $0x10] sm:$0xff]
                  %754 = vst [vmem:[%s748 + $0x10] sm:$0xff] %v753
                  %v755 = vld [vmem:[%s747 + $0x18] sm:$0xff]
                  %756 = vst [vmem:[%s748 + $0x18] sm:$0xff] %v755
                  %v757 = vld [vmem:[%s747 + $0x20] sm:$0xff]
                  %758 = vst [vmem:[%s748 + $0x20] sm:$0xff] %v757
                  %v759 = vld [vmem:[%s747 + $0x28] sm:$0xff]
                  %760 = vst [vmem:[%s748 + $0x28] sm:$0xff] %v759
                  %v761 = vld [vmem:[%s747 + $0x30] sm:$0xff]
                  %762 = vst [vmem:[%s748 + $0x30] sm:$0xff] %v761
                  %v763 = vld [vmem:[%s747 + $0x38] sm:$0xff]
                  %764 = vst [vmem:[%s748 + $0x38] sm:$0xff] %v763
                  %v765 = vld [vmem:[%s747 + $0x40] sm:$0xff]
                  %766 = vst [vmem:[%s748 + $0x40] sm:$0xff] %v765
                  %v767 = vld [vmem:[%s747 + $0x48] sm:$0xff]
                  %768 = vst [vmem:[%s748 + $0x48] sm:$0xff] %v767
                  %v769 = vld [vmem:[%s747 + $0x50] sm:$0xff]
                  %770 = vst [vmem:[%s748 + $0x50] sm:$0xff] %v769
                  %v771 = vld [vmem:[%s747 + $0x58] sm:$0xff]
                  %772 = vst [vmem:[%s748 + $0x58] sm:$0xff] %v771
                  %v773 = vld [vmem:[%s747 + $0x60] sm:$0xff]
                  %774 = vst [vmem:[%s748 + $0x60] sm:$0xff] %v773
                  %v775 = vld [vmem:[%s747 + $0x68] sm:$0xff]
                  %776 = vst [vmem:[%s748 + $0x68] sm:$0xff] %v775
                  %v777 = vld [vmem:[%s747 + $0x70] sm:$0xff]
                  %778 = vst [vmem:[%s748 + $0x70] sm:$0xff] %v777
                  %v779 = vld [vmem:[%s747 + $0x78] sm:$0xff]
                  %780 = vst [vmem:[%s748 + $0x78] sm:$0xff] %v779
                  %v781 = vld [vmem:[%s747 + $0x80] sm:$0xff]
                  %782 = vst [vmem:[%s748 + $0x80] sm:$0xff] %v781
                  %v783 = vld [vmem:[%s747 + $0x88] sm:$0xff]
                  %784 = vst [vmem:[%s748 + $0x88] sm:$0xff] %v783
                  %v785 = vld [vmem:[%s747 + $0x90] sm:$0xff]
                  %786 = vst [vmem:[%s748 + $0x90] sm:$0xff] %v785
                  %v787 = vld [vmem:[%s747 + $0x98] sm:$0xff]
                  %788 = vst [vmem:[%s748 + $0x98] sm:$0xff] %v787
                  %v789 = vld [vmem:[%s747 + $0xa0] sm:$0xff]
                  %790 = vst [vmem:[%s748 + $0xa0] sm:$0xff] %v789
                  %v791 = vld [vmem:[%s747 + $0xa8] sm:$0xff]
                  %792 = vst [vmem:[%s748 + $0xa8] sm:$0xff] %v791
                  %v793 = vld [vmem:[%s747 + $0xb0] sm:$0xff]
                  %794 = vst [vmem:[%s748 + $0xb0] sm:$0xff] %v793
                  %v795 = vld [vmem:[%s747 + $0xb8] sm:$0xff]
                  %796 = vst [vmem:[%s748 + $0xb8] sm:$0xff] %v795
                  %v797 = vld [vmem:[%s747 + $0xc0] sm:$0xff]
                  %798 = vst [vmem:[%s748 + $0xc0] sm:$0xff] %v797
                  %v799 = vld [vmem:[%s747 + $0xc8] sm:$0xff]
                  %800 = vst [vmem:[%s748 + $0xc8] sm:$0xff] %v799
                  %v801 = vld [vmem:[%s747 + $0xd0] sm:$0xff]
                  %802 = vst [vmem:[%s748 + $0xd0] sm:$0xff] %v801
                  %v803 = vld [vmem:[%s747 + $0xd8] sm:$0xff]
                  %804 = vst [vmem:[%s748 + $0xd8] sm:$0xff] %v803
                  %v805 = vld [vmem:[%s747 + $0xe0] sm:$0xff]
                  %806 = vst [vmem:[%s748 + $0xe0] sm:$0xff] %v805
                  %v807 = vld [vmem:[%s747 + $0xe8] sm:$0xff]
                  %808 = vst [vmem:[%s748 + $0xe8] sm:$0xff] %v807
                  %v809 = vld [vmem:[%s747 + $0xf0] sm:$0xff]
                  %810 = vst [vmem:[%s748 + $0xf0] sm:$0xff] %v809
                  %v811 = vld [vmem:[%s747 + $0xf8] sm:$0xff]
                  %812 = vst [vmem:[%s748 + $0xf8] sm:$0xff] %v811
                  %v813 = vld [vmem:[%s747 + $0x100] sm:$0xff]
                  %814 = vst [vmem:[%s748 + $0x100] sm:$0xff] %v813
                  %v815 = vld [vmem:[%s747 + $0x108] sm:$0xff]
                  %816 = vst [vmem:[%s748 + $0x108] sm:$0xff] %v815
                  %v817 = vld [vmem:[%s747 + $0x110] sm:$0xff]
                  %818 = vst [vmem:[%s748 + $0x110] sm:$0xff] %v817
                  %v819 = vld [vmem:[%s747 + $0x118] sm:$0xff]
                  %820 = vst [vmem:[%s748 + $0x118] sm:$0xff] %v819
                  %v821 = vld [vmem:[%s747 + $0x120] sm:$0xff]
                  %822 = vst [vmem:[%s748 + $0x120] sm:$0xff] %v821
                  %v823 = vld [vmem:[%s747 + $0x128] sm:$0xff]
                  %824 = vst [vmem:[%s748 + $0x128] sm:$0xff] %v823
                  %v825 = vld [vmem:[%s747 + $0x130] sm:$0xff]
                  %826 = vst [vmem:[%s748 + $0x130] sm:$0xff] %v825
                  %v827 = vld [vmem:[%s747 + $0x138] sm:$0xff]
                  %828 = vst [vmem:[%s748 + $0x138] sm:$0xff] %v827
                  %v829 = vld [vmem:[%s747 + $0x140] sm:$0xff]
                  %830 = vst [vmem:[%s748 + $0x140] sm:$0xff] %v829
                  %v831 = vld [vmem:[%s747 + $0x148] sm:$0xff]
                  %832 = vst [vmem:[%s748 + $0x148] sm:$0xff] %v831
                  %v833 = vld [vmem:[%s747 + $0x150] sm:$0xff]
                  %834 = vst [vmem:[%s748 + $0x150] sm:$0xff] %v833
                  %v835 = vld [vmem:[%s747 + $0x158] sm:$0xff]
                  %836 = vst [vmem:[%s748 + $0x158] sm:$0xff] %v835
                  %v837 = vld [vmem:[%s747 + $0x160] sm:$0xff]
                  %838 = vst [vmem:[%s748 + $0x160] sm:$0xff] %v837
                  %v839 = vld [vmem:[%s747 + $0x168] sm:$0xff]
                  %840 = vst [vmem:[%s748 + $0x168] sm:$0xff] %v839
                  %v841 = vld [vmem:[%s747 + $0x170] sm:$0xff]
                  %842 = vst [vmem:[%s748 + $0x170] sm:$0xff] %v841
                  %v843 = vld [vmem:[%s747 + $0x178] sm:$0xff]
                  %844 = vst [vmem:[%s748 + $0x178] sm:$0xff] %v843
                  %v845 = vld [vmem:[%s747 + $0x180] sm:$0xff]
                  %846 = vst [vmem:[%s748 + $0x180] sm:$0xff] %v845
                  %v847 = vld [vmem:[%s747 + $0x188] sm:$0xff]
                  %848 = vst [vmem:[%s748 + $0x188] sm:$0xff] %v847
                  %v849 = vld [vmem:[%s747 + $0x190] sm:$0xff]
                  %850 = vst [vmem:[%s748 + $0x190] sm:$0xff] %v849
                  %v851 = vld [vmem:[%s747 + $0x198] sm:$0xff]
                  %852 = vst [vmem:[%s748 + $0x198] sm:$0xff] %v851
                  %v853 = vld [vmem:[%s747 + $0x1a0] sm:$0xff]
                  %854 = vst [vmem:[%s748 + $0x1a0] sm:$0xff] %v853
                  %v855 = vld [vmem:[%s747 + $0x1a8] sm:$0xff]
                  %856 = vst [vmem:[%s748 + $0x1a8] sm:$0xff] %v855
                  %v857 = vld [vmem:[%s747 + $0x1b0] sm:$0xff]
                  %858 = vst [vmem:[%s748 + $0x1b0] sm:$0xff] %v857
                  %v859 = vld [vmem:[%s747 + $0x1b8] sm:$0xff]
                  %860 = vst [vmem:[%s748 + $0x1b8] sm:$0xff] %v859
                  %v861 = vld [vmem:[%s747 + $0x1c0] sm:$0xff]
                  %862 = vst [vmem:[%s748 + $0x1c0] sm:$0xff] %v861
                  %v863 = vld [vmem:[%s747 + $0x1c8] sm:$0xff]
                  %864 = vst [vmem:[%s748 + $0x1c8] sm:$0xff] %v863
                  %v865 = vld [vmem:[%s747 + $0x1d0] sm:$0xff]
                  %866 = vst [vmem:[%s748 + $0x1d0] sm:$0xff] %v865
                  %v867 = vld [vmem:[%s747 + $0x1d8] sm:$0xff]
                  %868 = vst [vmem:[%s748 + $0x1d8] sm:$0xff] %v867
                  %v869 = vld [vmem:[%s747 + $0x1e0] sm:$0xff]
                  %870 = vst [vmem:[%s748 + $0x1e0] sm:$0xff] %v869
                  %v871 = vld [vmem:[%s747 + $0x1e8] sm:$0xff]
                  %872 = vst [vmem:[%s748 + $0x1e8] sm:$0xff] %v871
                  %v873 = vld [vmem:[%s747 + $0x1f0] sm:$0xff]
                  %874 = vst [vmem:[%s748 + $0x1f0] sm:$0xff] %v873
                  %v875 = vld [vmem:[%s747 + $0x1f8] sm:$0xff]
                  %876 = vst [vmem:[%s748 + $0x1f8] sm:$0xff] %v875
                  %s877 = sadd.s32 1, %s746
                  %p878 = scmp.ge.s32.totalorder %s877, %s737
                  %s879 = scalar_select %p878, 0, %s877
                  %s880 = smul.u32 %s879, 512
                  %s881 = smul.u32 %s879, 512
                  %s882 = scalar_lea.vmem %s697, %s880 [#allocation2]
                  %s883 = scalar_lea.vmem %s708, %s881
                $region64: #{spk_decoder_forward.1} parent=58 // loop_footer
                  %s743 = sadd.s32 %s741, 1
                $region65: #{spk_decoder_forward.1} parent=58 // loop_footer_branch
                  %740 = sbr.rel target = $region61
                $region66: #{spk_decoder_forward.1} parent=58 // loop_exit
                  _
                %s884 = sshrl.u32 %s736, 6
                %s885 = sand.u32 %s736, 63
                %s886 = smul.u32 %s884, 64
                %s887 = smul.u32 128, %s886
                %s888 = sshra.s32 %s887, 4
                %s889 = scalar_lea.vmem %s697, %s888 [#allocation2]
                %s890 = smul.u32 128, %s886
                %s891 = sshra.s32 %s890, 4
                %s892 = scalar_lea.vmem %s708, %s891
                // While loop
                $region67: #{spk_decoder_forward.1} parent=58 // loop_pre_header
                  _
                $region68: #{spk_decoder_forward.1} parent=58 // loop_header
                  %s896 = sphi 0, %s898
                  %p897 = scmp.ge.s32.totalorder %s896, %s885
                  %s901 = sphi 0, %s908
                  %s902 = sphi %s889, %s911
                  %s903 = sphi %s892, %s912
                $region69: #{spk_decoder_forward.1} parent=58 // loop_header_branch
                  %900 = sbr.rel (%p897) target = $region73
                $region70: #{spk_decoder_forward.1} parent=58 // loop_body
                  %v904 = vld [vmem:[%s902] sm:$0xff]
                  %905 = vst [vmem:[%s903] sm:$0xff] %v904
                  %s906 = sadd.s32 1, %s901
                  %p907 = scmp.ge.s32.totalorder %s906, %s885
                  %s908 = scalar_select %p907, 0, %s906
                  %s909 = smul.u32 %s908, 8
                  %s910 = smul.u32 %s908, 8
                  %s911 = scalar_lea.vmem %s889, %s909 [#allocation2]
                  %s912 = scalar_lea.vmem %s892, %s910
                $region71: #{spk_decoder_forward.1} parent=58 // loop_footer
                  %s898 = sadd.s32 %s896, 1
                $region72: #{spk_decoder_forward.1} parent=58 // loop_footer_branch
                  %895 = sbr.rel target = $region68
                $region73: #{spk_decoder_forward.1} parent=58 // loop_exit
                  _
              $region59: #{spk_decoder_forward.1} parent=43 // pred_fallthru
                _
              %p913 = pneg %p732
              // Predicated region
              $region74: #{spk_decoder_forward.1} parent=43 // pred_check
                _
              $region75: #{spk_decoder_forward.1} parent=43 // pred_check_branch
                %915 = sbr.rel (%p732) target = $region77
              $region76: #{spk_decoder_forward.1} parent=43 // pred_region
                %s916 = sand.u32 %s709, 7
                %s917 = ssub.s32 %s709, %s916
                %s918 = scalar_lea.vmem %s697, %s917 [#allocation2]
                %s919 = ssub.s32 %s709, %s916
                %s920 = scalar_lea.vmem %s708, %s919
                %s921 = sshrl.u32 %s709, 3
                %s922 = sshrl.u32 %s921, 6
                // While loop
                $region78: #{spk_decoder_forward.1} parent=76 // loop_pre_header
                  _
                $region79: #{spk_decoder_forward.1} parent=76 // loop_header
                  %s926 = sphi 0, %s928
                  %p927 = scmp.ge.s32.totalorder %s926, %s922
                  %s931 = sphi 0, %s1064
                  %s932 = sphi %s697, %s1067
                  %s933 = sphi %s708, %s1068
                $region80: #{spk_decoder_forward.1} parent=76 // loop_header_branch
                  %930 = sbr.rel (%p927) target = $region84
                $region81: #{spk_decoder_forward.1} parent=76 // loop_body
                  %v934 = vld [vmem:[%s932] sm:$0xff]
                  %935 = vst [vmem:[%s933] sm:$0xff] %v934
                  %v936 = vld [vmem:[%s932 + $0x8] sm:$0xff]
                  %937 = vst [vmem:[%s933 + $0x8] sm:$0xff] %v936
                  %v938 = vld [vmem:[%s932 + $0x10] sm:$0xff]
                  %939 = vst [vmem:[%s933 + $0x10] sm:$0xff] %v938
                  %v940 = vld [vmem:[%s932 + $0x18] sm:$0xff]
                  %941 = vst [vmem:[%s933 + $0x18] sm:$0xff] %v940
                  %v942 = vld [vmem:[%s932 + $0x20] sm:$0xff]
                  %943 = vst [vmem:[%s933 + $0x20] sm:$0xff] %v942
                  %v944 = vld [vmem:[%s932 + $0x28] sm:$0xff]
                  %945 = vst [vmem:[%s933 + $0x28] sm:$0xff] %v944
                  %v946 = vld [vmem:[%s932 + $0x30] sm:$0xff]
                  %947 = vst [vmem:[%s933 + $0x30] sm:$0xff] %v946
                  %v948 = vld [vmem:[%s932 + $0x38] sm:$0xff]
                  %949 = vst [vmem:[%s933 + $0x38] sm:$0xff] %v948
                  %v950 = vld [vmem:[%s932 + $0x40] sm:$0xff]
                  %951 = vst [vmem:[%s933 + $0x40] sm:$0xff] %v950
                  %v952 = vld [vmem:[%s932 + $0x48] sm:$0xff]
                  %953 = vst [vmem:[%s933 + $0x48] sm:$0xff] %v952
                  %v954 = vld [vmem:[%s932 + $0x50] sm:$0xff]
                  %955 = vst [vmem:[%s933 + $0x50] sm:$0xff] %v954
                  %v956 = vld [vmem:[%s932 + $0x58] sm:$0xff]
                  %957 = vst [vmem:[%s933 + $0x58] sm:$0xff] %v956
                  %v958 = vld [vmem:[%s932 + $0x60] sm:$0xff]
                  %959 = vst [vmem:[%s933 + $0x60] sm:$0xff] %v958
                  %v960 = vld [vmem:[%s932 + $0x68] sm:$0xff]
                  %961 = vst [vmem:[%s933 + $0x68] sm:$0xff] %v960
                  %v962 = vld [vmem:[%s932 + $0x70] sm:$0xff]
                  %963 = vst [vmem:[%s933 + $0x70] sm:$0xff] %v962
                  %v964 = vld [vmem:[%s932 + $0x78] sm:$0xff]
                  %965 = vst [vmem:[%s933 + $0x78] sm:$0xff] %v964
                  %v966 = vld [vmem:[%s932 + $0x80] sm:$0xff]
                  %967 = vst [vmem:[%s933 + $0x80] sm:$0xff] %v966
                  %v968 = vld [vmem:[%s932 + $0x88] sm:$0xff]
                  %969 = vst [vmem:[%s933 + $0x88] sm:$0xff] %v968
                  %v970 = vld [vmem:[%s932 + $0x90] sm:$0xff]
                  %971 = vst [vmem:[%s933 + $0x90] sm:$0xff] %v970
                  %v972 = vld [vmem:[%s932 + $0x98] sm:$0xff]
                  %973 = vst [vmem:[%s933 + $0x98] sm:$0xff] %v972
                  %v974 = vld [vmem:[%s932 + $0xa0] sm:$0xff]
                  %975 = vst [vmem:[%s933 + $0xa0] sm:$0xff] %v974
                  %v976 = vld [vmem:[%s932 + $0xa8] sm:$0xff]
                  %977 = vst [vmem:[%s933 + $0xa8] sm:$0xff] %v976
                  %v978 = vld [vmem:[%s932 + $0xb0] sm:$0xff]
                  %979 = vst [vmem:[%s933 + $0xb0] sm:$0xff] %v978
                  %v980 = vld [vmem:[%s932 + $0xb8] sm:$0xff]
                  %981 = vst [vmem:[%s933 + $0xb8] sm:$0xff] %v980
                  %v982 = vld [vmem:[%s932 + $0xc0] sm:$0xff]
                  %983 = vst [vmem:[%s933 + $0xc0] sm:$0xff] %v982
                  %v984 = vld [vmem:[%s932 + $0xc8] sm:$0xff]
                  %985 = vst [vmem:[%s933 + $0xc8] sm:$0xff] %v984
                  %v986 = vld [vmem:[%s932 + $0xd0] sm:$0xff]
                  %987 = vst [vmem:[%s933 + $0xd0] sm:$0xff] %v986
                  %v988 = vld [vmem:[%s932 + $0xd8] sm:$0xff]
                  %989 = vst [vmem:[%s933 + $0xd8] sm:$0xff] %v988
                  %v990 = vld [vmem:[%s932 + $0xe0] sm:$0xff]
                  %991 = vst [vmem:[%s933 + $0xe0] sm:$0xff] %v990
                  %v992 = vld [vmem:[%s932 + $0xe8] sm:$0xff]
                  %993 = vst [vmem:[%s933 + $0xe8] sm:$0xff] %v992
                  %v994 = vld [vmem:[%s932 + $0xf0] sm:$0xff]
                  %995 = vst [vmem:[%s933 + $0xf0] sm:$0xff] %v994
                  %v996 = vld [vmem:[%s932 + $0xf8] sm:$0xff]
                  %997 = vst [vmem:[%s933 + $0xf8] sm:$0xff] %v996
                  %v998 = vld [vmem:[%s932 + $0x100] sm:$0xff]
                  %999 = vst [vmem:[%s933 + $0x100] sm:$0xff] %v998
                  %v1000 = vld [vmem:[%s932 + $0x108] sm:$0xff]
                  %1001 = vst [vmem:[%s933 + $0x108] sm:$0xff] %v1000
                  %v1002 = vld [vmem:[%s932 + $0x110] sm:$0xff]
                  %1003 = vst [vmem:[%s933 + $0x110] sm:$0xff] %v1002
                  %v1004 = vld [vmem:[%s932 + $0x118] sm:$0xff]
                  %1005 = vst [vmem:[%s933 + $0x118] sm:$0xff] %v1004
                  %v1006 = vld [vmem:[%s932 + $0x120] sm:$0xff]
                  %1007 = vst [vmem:[%s933 + $0x120] sm:$0xff] %v1006
                  %v1008 = vld [vmem:[%s932 + $0x128] sm:$0xff]
                  %1009 = vst [vmem:[%s933 + $0x128] sm:$0xff] %v1008
                  %v1010 = vld [vmem:[%s932 + $0x130] sm:$0xff]
                  %1011 = vst [vmem:[%s933 + $0x130] sm:$0xff] %v1010
                  %v1012 = vld [vmem:[%s932 + $0x138] sm:$0xff]
                  %1013 = vst [vmem:[%s933 + $0x138] sm:$0xff] %v1012
                  %v1014 = vld [vmem:[%s932 + $0x140] sm:$0xff]
                  %1015 = vst [vmem:[%s933 + $0x140] sm:$0xff] %v1014
                  %v1016 = vld [vmem:[%s932 + $0x148] sm:$0xff]
                  %1017 = vst [vmem:[%s933 + $0x148] sm:$0xff] %v1016
                  %v1018 = vld [vmem:[%s932 + $0x150] sm:$0xff]
                  %1019 = vst [vmem:[%s933 + $0x150] sm:$0xff] %v1018
                  %v1020 = vld [vmem:[%s932 + $0x158] sm:$0xff]
                  %1021 = vst [vmem:[%s933 + $0x158] sm:$0xff] %v1020
                  %v1022 = vld [vmem:[%s932 + $0x160] sm:$0xff]
                  %1023 = vst [vmem:[%s933 + $0x160] sm:$0xff] %v1022
                  %v1024 = vld [vmem:[%s932 + $0x168] sm:$0xff]
                  %1025 = vst [vmem:[%s933 + $0x168] sm:$0xff] %v1024
                  %v1026 = vld [vmem:[%s932 + $0x170] sm:$0xff]
                  %1027 = vst [vmem:[%s933 + $0x170] sm:$0xff] %v1026
                  %v1028 = vld [vmem:[%s932 + $0x178] sm:$0xff]
                  %1029 = vst [vmem:[%s933 + $0x178] sm:$0xff] %v1028
                  %v1030 = vld [vmem:[%s932 + $0x180] sm:$0xff]
                  %1031 = vst [vmem:[%s933 + $0x180] sm:$0xff] %v1030
                  %v1032 = vld [vmem:[%s932 + $0x188] sm:$0xff]
                  %1033 = vst [vmem:[%s933 + $0x188] sm:$0xff] %v1032
                  %v1034 = vld [vmem:[%s932 + $0x190] sm:$0xff]
                  %1035 = vst [vmem:[%s933 + $0x190] sm:$0xff] %v1034
                  %v1036 = vld [vmem:[%s932 + $0x198] sm:$0xff]
                  %1037 = vst [vmem:[%s933 + $0x198] sm:$0xff] %v1036
                  %v1038 = vld [vmem:[%s932 + $0x1a0] sm:$0xff]
                  %1039 = vst [vmem:[%s933 + $0x1a0] sm:$0xff] %v1038
                  %v1040 = vld [vmem:[%s932 + $0x1a8] sm:$0xff]
                  %1041 = vst [vmem:[%s933 + $0x1a8] sm:$0xff] %v1040
                  %v1042 = vld [vmem:[%s932 + $0x1b0] sm:$0xff]
                  %1043 = vst [vmem:[%s933 + $0x1b0] sm:$0xff] %v1042
                  %v1044 = vld [vmem:[%s932 + $0x1b8] sm:$0xff]
                  %1045 = vst [vmem:[%s933 + $0x1b8] sm:$0xff] %v1044
                  %v1046 = vld [vmem:[%s932 + $0x1c0] sm:$0xff]
                  %1047 = vst [vmem:[%s933 + $0x1c0] sm:$0xff] %v1046
                  %v1048 = vld [vmem:[%s932 + $0x1c8] sm:$0xff]
                  %1049 = vst [vmem:[%s933 + $0x1c8] sm:$0xff] %v1048
                  %v1050 = vld [vmem:[%s932 + $0x1d0] sm:$0xff]
                  %1051 = vst [vmem:[%s933 + $0x1d0] sm:$0xff] %v1050
                  %v1052 = vld [vmem:[%s932 + $0x1d8] sm:$0xff]
                  %1053 = vst [vmem:[%s933 + $0x1d8] sm:$0xff] %v1052
                  %v1054 = vld [vmem:[%s932 + $0x1e0] sm:$0xff]
                  %1055 = vst [vmem:[%s933 + $0x1e0] sm:$0xff] %v1054
                  %v1056 = vld [vmem:[%s932 + $0x1e8] sm:$0xff]
                  %1057 = vst [vmem:[%s933 + $0x1e8] sm:$0xff] %v1056
                  %v1058 = vld [vmem:[%s932 + $0x1f0] sm:$0xff]
                  %1059 = vst [vmem:[%s933 + $0x1f0] sm:$0xff] %v1058
                  %v1060 = vld [vmem:[%s932 + $0x1f8] sm:$0xff]
                  %1061 = vst [vmem:[%s933 + $0x1f8] sm:$0xff] %v1060
                  %s1062 = sadd.s32 1, %s931
                  %p1063 = scmp.ge.s32.totalorder %s1062, %s922
                  %s1064 = scalar_select %p1063, 0, %s1062
                  %s1065 = smul.u32 %s1064, 512
                  %s1066 = smul.u32 %s1064, 512
                  %s1067 = scalar_lea.vmem %s697, %s1065 [#allocation2]
                  %s1068 = scalar_lea.vmem %s708, %s1066
                $region82: #{spk_decoder_forward.1} parent=76 // loop_footer
                  %s928 = sadd.s32 %s926, 1
                $region83: #{spk_decoder_forward.1} parent=76 // loop_footer_branch
                  %925 = sbr.rel target = $region79
                $region84: #{spk_decoder_forward.1} parent=76 // loop_exit
                  _
                %s1069 = sshrl.u32 %s921, 6
                %s1070 = sand.u32 %s921, 63
                %s1071 = smul.u32 %s1069, 64
                %s1072 = smul.u32 128, %s1071
                %s1073 = sshra.s32 %s1072, 4
                %s1074 = scalar_lea.vmem %s697, %s1073 [#allocation2]
                %s1075 = smul.u32 128, %s1071
                %s1076 = sshra.s32 %s1075, 4
                %s1077 = scalar_lea.vmem %s708, %s1076
                // While loop
                $region85: #{spk_decoder_forward.1} parent=76 // loop_pre_header
                  _
                $region86: #{spk_decoder_forward.1} parent=76 // loop_header
                  %s1081 = sphi 0, %s1083
                  %p1082 = scmp.ge.s32.totalorder %s1081, %s1070
                  %s1086 = sphi 0, %s1093
                  %s1087 = sphi %s1074, %s1096
                  %s1088 = sphi %s1077, %s1097
                $region87: #{spk_decoder_forward.1} parent=76 // loop_header_branch
                  %1085 = sbr.rel (%p1082) target = $region91
                $region88: #{spk_decoder_forward.1} parent=76 // loop_body
                  %v1089 = vld [vmem:[%s1087] sm:$0xff]
                  %1090 = vst [vmem:[%s1088] sm:$0xff] %v1089
                  %s1091 = sadd.s32 1, %s1086
                  %p1092 = scmp.ge.s32.totalorder %s1091, %s1070
                  %s1093 = scalar_select %p1092, 0, %s1091
                  %s1094 = smul.u32 %s1093, 8
                  %s1095 = smul.u32 %s1093, 8
                  %s1096 = scalar_lea.vmem %s1074, %s1094 [#allocation2]
                  %s1097 = scalar_lea.vmem %s1077, %s1095
                $region89: #{spk_decoder_forward.1} parent=76 // loop_footer
                  %s1083 = sadd.s32 %s1081, 1
                $region90: #{spk_decoder_forward.1} parent=76 // loop_footer_branch
                  %1080 = sbr.rel target = $region86
                $region91: #{spk_decoder_forward.1} parent=76 // loop_exit
                  _
                %s1098 = sshllo.u32 0, %s916
                loop: start=0, step=1, limit=1
                $region92: #{spk_decoder_forward.1} parent=76 // loop_pre_header
                  _
                $region93: #{spk_decoder_forward.1} parent=76 // loop_header
                  %s1100 = sphi 0, %s1104
                  %p1101 = scmp.ge.s32.totalorder %s1100, 1
                  %s1105 = sphi %s918, %s918
                  %s1106 = sphi %s920, %s920
                $region94: #{spk_decoder_forward.1} parent=76 // loop_header_branch
                  %1103 = sbr.rel (%p1101) target = $region98
                $region95: #{spk_decoder_forward.1} parent=76 // loop_body
                  %v1107 = vld [vmem:[%s1105] sm:%s1098]
                  %1108 = vst [vmem:[%s1106] sm:%s1098] %v1107
                $region96: #{spk_decoder_forward.1} parent=76 // loop_footer
                  %s1104 = sadd.s32 1, %s1100
                $region97: #{spk_decoder_forward.1} parent=76 // loop_footer_branch
                  %1099 = sbr.rel target = $region93
                $region98: #{spk_decoder_forward.1} parent=76 // loop_exit
                  _
              $region77: #{spk_decoder_forward.1} parent=43 // pred_fallthru
                _
            $region44: #{spk_decoder_forward.1} parent=39 // pred_fallthru
              _
            // Predicated region
            $region45: #{spk_decoder_forward.1} parent=39 // pred_check
              %p717 = pneg %p713
            $region46: #{spk_decoder_forward.1} parent=39 // pred_check_branch
              %719 = sbr.rel (%p717) target = $region48
            $region47: #{spk_decoder_forward.1} parent=39 // pred_region
              %s720 = sshllo.u32 0, %s709
              loop: start=0, step=1, limit=1
              $region49: #{spk_decoder_forward.1} parent=47 // loop_pre_header
                _
              $region50: #{spk_decoder_forward.1} parent=47 // loop_header
                %s722 = sphi 0, %s726
                %p723 = scmp.ge.s32.totalorder %s722, 1
                %s727 = sphi %s697, %s697
                %s728 = sphi %s708, %s708
              $region51: #{spk_decoder_forward.1} parent=47 // loop_header_branch
                %725 = sbr.rel (%p723) target = $region55
              $region52: #{spk_decoder_forward.1} parent=47 // loop_body
                %v729 = vld [vmem:[%s727] sm:%s720]
                %730 = vst [vmem:[%s728] sm:%s720] %v729
              $region53: #{spk_decoder_forward.1} parent=47 // loop_footer
                %s726 = sadd.s32 1, %s722
              $region54: #{spk_decoder_forward.1} parent=47 // loop_footer_branch
                %721 = sbr.rel target = $region50
              $region55: #{spk_decoder_forward.1} parent=47 // loop_exit
                _
            $region48: #{spk_decoder_forward.1} parent=39 // pred_fallthru
              _
          $region40: #{spk_decoder_forward.1} parent=35 // pred_fallthru
            _
          %1109 = vnop
        $region36: #{spk_decoder_forward.1} parent=31 // pred_fallthru
          _
      $region32: #{spk_decoder_forward.1} parent=5 // pred_fallthru
        _
      %p1110 = scmp.le.s32.totalorder 2, %s9
      // Predicated region
      $region99: #{spk_decoder_forward.1} parent=5 // pred_check
        %p1111 = pneg %p1110
      $region100: #{spk_decoder_forward.1} parent=5 // pred_check_branch
        %1113 = sbr.rel (%p1111) target = $region102
      $region101: #{spk_decoder_forward.1} parent=5 // pred_region
        %s1114 = ssub.s32 %s9, 2
        // Predicated region
        $region103: #{spk_decoder_forward.1} parent=101 // pred_check
          %p1115 = pneg %p111
        $region104: #{spk_decoder_forward.1} parent=101 // pred_check_branch
          %1117 = sbr.rel (%p1115) target = $region106
        $region105: #{spk_decoder_forward.1} parent=101 // pred_region
          %s1118 = sand.u32 %s96, 1
          %s1119 = sand.u32 %s96, 1
          %s1120 = smul.addr %s1119, 8
          %s1121 = scalar_lea.vmem [#allocation2], %s1120
        $region106: #{spk_decoder_forward.1} parent=101 // pred_fallthru
          _
      $region102: #{spk_decoder_forward.1} parent=5 // pred_fallthru
        _
    $region6: #{spk_decoder_forward.1} parent=1 // loop_footer
      %s13 = sadd.s32 1, %s9
    $region7: #{spk_decoder_forward.1} parent=1 // loop_footer_branch
      %8 = sbr.rel target = $region3
    $region8: #{spk_decoder_forward.1} parent=1 // loop_exit
      _

</llo_original>
